<compile_context>
chip_gen: v7x
topology: tpu7x:2x2x1
jax: 0.10.0
libtpu: 0.0.40
codegen_flags: <defaults>
</compile_context>

<pallas_src>
import functools

import jax
import jax.numpy as jnp
from jax.experimental import pallas as pl
from jax.experimental.pallas import tpu as pltpu

BN_EPS = 1e-5    # nn.BatchNorm1d default eps
L2_EPS = 1e-12   # F.normalize default eps


def _fc_kernel(x_ref, w_ref, b_ref, img_ref, rgn_ref, *, regions):
    """One batch tile: fc, per-sample region mean, per-region L2 normalize."""
    tb, e = img_ref.shape
    # fc: (block_b*R, D) @ (D, E) on the MXU, f32 accumulation.
    rgn = jnp.dot(x_ref[...], w_ref[...], preferred_element_type=jnp.float32)
    rgn = rgn + b_ref[...].astype(jnp.float32)
    # img partial: mean over regions. Value-only reshape of the f32 result
    # (for R == 8 this matches the f32 sublane pack -> no repack).
    img_ref[...] = jnp.mean(rgn.reshape(tb, regions, e), axis=1)
    # rgn_emb = F.normalize(rgn, dim=-1): rsqrt (EUP) on clamped sum of squares.
    ss = jnp.sum(rgn * rgn, axis=-1, keepdims=True)
    rgn_ref[...] = (rgn * jax.lax.rsqrt(jnp.maximum(ss, L2_EPS * L2_EPS))
                    ).astype(rgn_ref.dtype)


def _finalize_kernel(img_ref, gamma_ref, beta_ref, out_ref, *,
                     direction, use_abs, no_imgnorm):
    """Full-batch BatchNorm1d (training stats) + L2 norm + abs on (B, E)."""
    img = img_ref[...].astype(jnp.float32)
    if direction == 't2i':
        # TODO(synk): eval-mode BatchNorm (running_mean/var) not implemented.
        mu = jnp.mean(img, axis=0, keepdims=True)
        cen = img - mu
        var = jnp.mean(cen * cen, axis=0, keepdims=True)
        img = (cen * jax.lax.rsqrt(var + BN_EPS)
               * gamma_ref[...].astype(jnp.float32)
               + beta_ref[...].astype(jnp.float32))
    if not no_imgnorm:
        ss = jnp.sum(img * img, axis=-1, keepdims=True)
        img = img * jax.lax.rsqrt(jnp.maximum(ss, L2_EPS * L2_EPS))
    if use_abs:
        img = jnp.abs(img)
    out_ref[...] = img.astype(out_ref.dtype)


def prepare_fc_weight(fc_weight, dtype=jnp.bfloat16):
    """One-time layout prep: PyTorch (E, D) weight -> (D, E) in matmul dtype."""
    return jnp.asarray(fc_weight).astype(dtype).T


def _vmem_budget_bytes():
    """~80% of this generation's physical VMEM (v5e/v6e: 128 MiB, v7x: 64 MiB)."""
    try:
        cap = pltpu.get_tpu_info().vmem_capacity_bytes
    except Exception:
        cap = 64 << 20
    return int(cap * 0.8)


def _tile_footprint_bytes(tb, R, D, E, x_size, w_size, out_size):
    return (2 * D * E * w_size            # resident weight (2 pipeline slots)
            + 2 * E * 4                   # bias
            + 2 * tb * R * D * x_size     # x tile, double-buffered
            + 2 * tb * R * E * out_size   # rgn tile, double-buffered
            + 2 * tb * E * 4              # img partial tile, double-buffered
            + 3 * tb * R * E * 4)         # in-kernel f32 temporaries


def _pick_block_b(B, R, D, E, x_size, w_size, out_size, budget):
    """Largest sublane-aligned divisor of B whose footprint fits `budget`,
    preferring MXU-friendly M = block_b*R (multiple of 128)."""
    cands = [tb for tb in range(B, 0, -1)
             if B % tb == 0 and (tb == B or tb % 8 == 0)]
    if not cands:
        cands = [B]
    fitting = [tb for tb in cands
               if _tile_footprint_bytes(tb, R, D, E, x_size, w_size, out_size)
               <= budget]
    if not fitting:
        return cands[-1]
    for tb in fitting:
        if (tb * R) % 128 == 0:
            return tb
    return fitting[0]


def encoder_image_precomp(images, fc_weight_t, fc_bias, bn_gamma, bn_beta, *,
                          direction='t2i', use_abs=False, no_imgnorm=False,
                          block_b=None, out_dtype=jnp.bfloat16):
    """images: (B, R, D); fc_weight_t: (D, E) pre-transposed; fc_bias/bn_*: (E,).
    Returns (img_emb (B, E) float32, rgn_emb (B, R, E) out_dtype)."""
    B, R, D = images.shape
    E = fc_weight_t.shape[1]
    assert fc_weight_t.shape == (D, E)

    x_size = jnp.dtype(images.dtype).itemsize
    w_size = jnp.dtype(fc_weight_t.dtype).itemsize
    o_size = jnp.dtype(out_dtype).itemsize
    budget = _vmem_budget_bytes()
    if block_b is None:
        block_b = _pick_block_b(B, R, D, E, x_size, w_size, o_size, budget)
    assert B % block_b == 0, "batch must be divisible by block_b (pad the batch)"
    nb = B // block_b

    b2 = jnp.asarray(fc_bias, jnp.float32).reshape(1, E)
    g2 = jnp.asarray(bn_gamma, jnp.float32).reshape(1, E)
    be2 = jnp.asarray(bn_beta, jnp.float32).reshape(1, E)

    # Flatten the batch*region axis outside the kernel (contiguous -> free);
    # avoids any in-kernel repack of the bf16 input when R < sublane pack.
    x_flat = images.reshape(B * R, D)

    est = _tile_footprint_bytes(block_b, R, D, E, x_size, w_size, o_size)
    vmem_limit = int(min(budget, max(32 << 20, est + (8 << 20))))

    img_partial, rgn_flat = pl.pallas_call(
        functools.partial(_fc_kernel, regions=R),
        out_shape=(jax.ShapeDtypeStruct((B, E), jnp.float32),
                   jax.ShapeDtypeStruct((B * R, E), out_dtype)),
        grid_spec=pltpu.PrefetchScalarGridSpec(
            num_scalar_prefetch=0,
            grid=(nb,),
            in_specs=[
                pl.BlockSpec((block_b * R, D), lambda i: (i, 0)),   # x tile
                pl.BlockSpec((D, E), lambda i: (0, 0)),             # weight (resident)
                pl.BlockSpec((1, E), lambda i: (0, 0)),             # bias (resident)
            ],
            out_specs=(
                pl.BlockSpec((block_b, E), lambda i: (i, 0)),       # img partial tile
                pl.BlockSpec((block_b * R, E), lambda i: (i, 0)),   # rgn tile
            ),
        ),
        compiler_params=pltpu.CompilerParams(
            # No output revisit / in-kernel finalize -> batch axis can be
            # sharded across TensorCores on v7x.
            dimension_semantics=("parallel",),
            vmem_limit_bytes=vmem_limit,
        ),
    )(x_flat, fc_weight_t, b2)

    # Finalize on the tiny (B, E) embedding: full-batch BatchNorm1d (training
    # statistics) + L2 normalize + optional abs, as a single-step pallas_call.
    img_emb = pl.pallas_call(
        functools.partial(_finalize_kernel, direction=direction,
                          use_abs=use_abs, no_imgnorm=no_imgnorm),
        out_shape=jax.ShapeDtypeStruct((B, E), jnp.float32),
        grid=(1,),
        in_specs=[pl.BlockSpec((B, E), lambda i: (0, 0)),
                  pl.BlockSpec((1, E), lambda i: (0, 0)),
                  pl.BlockSpec((1, E), lambda i: (0, 0))],
        out_specs=pl.BlockSpec((B, E), lambda i: (0, 0)),
    )(img_partial, g2, be2)

    return img_emb, rgn_flat.reshape(B, R, E)


def _reference(images_f32, w_t_f32, fc_bias, bn_gamma, bn_beta, *,
               direction='t2i', use_abs=False, no_imgnorm=False):
    rgn = jnp.einsum('brd,de->bre', images_f32, w_t_f32) + fc_bias
    img = jnp.mean(rgn, axis=1)
    if direction == 't2i':
        mu = jnp.mean(img, axis=0, keepdims=True)
        var = jnp.mean((img - mu) ** 2, axis=0, keepdims=True)
        img = (img - mu) / jnp.sqrt(var + BN_EPS) * bn_gamma + bn_beta
    if not no_imgnorm:
        img = img / jnp.maximum(jnp.linalg.norm(img, axis=-1, keepdims=True), L2_EPS)
    if use_abs:
        img = jnp.abs(img)
    rgn = rgn / jnp.maximum(jnp.linalg.norm(rgn, axis=-1, keepdims=True), L2_EPS)
    return img, rgn


if __name__ == "__main__":
    # Small, lane-aligned shapes consistent with the module (region features).
    B, R, IMG_DIM, EMBED = 32, 8, 256, 256
    BLOCK_B = 16          # grid of 2; M = block_b*R = 128 (MXU/sublane aligned)
    direction, use_abs, no_imgnorm = 't2i', False, False

    key = jax.random.PRNGKey(0)
    k_x, k_w = jax.random.split(key)

    images_f32 = jax.random.normal(k_x, (B, R, IMG_DIM), dtype=jnp.float32)

    # Xavier-uniform init as in init_weights(): r = sqrt(6)/sqrt(in+out), bias = 0.
    r = jnp.sqrt(6.0) / jnp.sqrt(IMG_DIM + EMBED)
    fc_weight = jax.random.uniform(k_w, (EMBED, IMG_DIM), jnp.float32, -r, r)
    fc_bias = jnp.zeros((EMBED,), jnp.float32)
    bn_gamma = jnp.ones((EMBED,), jnp.float32)    # fresh BatchNorm1d affine params
    bn_beta = jnp.zeros((EMBED,), jnp.float32)

    # bf16 activations + weight in HBM; weight transpose done once here.
    images = images_f32.astype(jnp.bfloat16)
    w_t = prepare_fc_weight(fc_weight, dtype=jnp.bfloat16)        # (D, E)

    img_emb, rgn_emb = encoder_image_precomp(
        images, w_t, fc_bias, bn_gamma, bn_beta,
        direction=direction, use_abs=use_abs, no_imgnorm=no_imgnorm,
        block_b=BLOCK_B)
    jax.block_until_ready((img_emb, rgn_emb))

    # Reference in f32 on the same bf16-quantized inputs.
    img_ref, rgn_ref = _reference(
        images.astype(jnp.float32), w_t.astype(jnp.float32),
        fc_bias, bn_gamma, bn_beta,
        direction=direction, use_abs=use_abs, no_imgnorm=no_imgnorm)

    assert img_emb.shape == (B, EMBED) and rgn_emb.shape == (B, R, EMBED)
    assert img_emb.dtype == jnp.float32 and rgn_emb.dtype == jnp.bfloat16
    assert jnp.allclose(img_emb, img_ref, atol=1e-3, rtol=1e-3)
    assert jnp.allclose(rgn_emb.astype(jnp.float32), rgn_ref, atol=2e-2, rtol=2e-2)
    print("KERNEL_OK")
</pallas_src>

<mosaic_0001>
module attributes {stable_mosaic.version = 11 : i64} {
  func.func @_fc_kernel(%arg0: i32, %arg1: memref<128x256xbf16, #tpu.memory_space<vmem>>, %arg2: memref<256x256xbf16, #tpu.memory_space<vmem>>, %arg3: memref<1x256xf32, #tpu.memory_space<vmem>>, %arg4: memref<16x256xf32, #tpu.memory_space<vmem>>, %arg5: memref<128x256xbf16, #tpu.memory_space<vmem>>) attributes {dimension_semantics = [#tpu.dimension_semantics<parallel>], iteration_bounds = array<i64: 2>, scalar_prefetch = 0 : i64, scratch_operands = 0 : i64, tpu.core_type = #tpu.core_type<tc>, window_params = [{transform_indices = @transform_0, window_bounds = array<i64: 128, 256>}, {pipeline_mode = #tpu.pipeline_mode<synchronous>, transform_indices = @transform_1, window_bounds = array<i64: 256, 256>}, {pipeline_mode = #tpu.pipeline_mode<synchronous>, transform_indices = @transform_2, window_bounds = array<i64: 1, 256>}, {transform_indices = @transform_3, window_bounds = array<i64: 16, 256>}, {transform_indices = @transform_4, window_bounds = array<i64: 128, 256>}]} {
    %c0 = arith.constant 0 : index
    %c0_0 = arith.constant 0 : index
    %0 = vector.load %arg1[%c0, %c0_0] : memref<128x256xbf16, #tpu.memory_space<vmem>>, vector<128x256xbf16>
    %c0_1 = arith.constant 0 : index
    %c0_2 = arith.constant 0 : index
    %1 = vector.load %arg2[%c0_1, %c0_2] : memref<256x256xbf16, #tpu.memory_space<vmem>>, vector<256x256xbf16>
    %cst = arith.constant dense<0.000000e+00> : vector<128x256xf32>
    %2 = tpu.matmul %0, %1, %cst {dimension_numbers = #tpu.dot_dimension_numbers<[1], [0], [0], [1], [0, 0, 1, 1], [], []>} : vector<128x256xbf16>, vector<256x256xbf16>, vector<128x256xf32> -> vector<128x256xf32>
    %c0_3 = arith.constant 0 : index
    %c0_4 = arith.constant 0 : index
    %3 = vector.load %arg3[%c0_3, %c0_4] : memref<1x256xf32, #tpu.memory_space<vmem>>, vector<1x256xf32>
    %4 = vector.broadcast %3 : vector<1x256xf32> to vector<128x256xf32>
    %5 = arith.addf %2, %4 : vector<128x256xf32>
    %6 = vector.shape_cast %5 : vector<128x256xf32> to vector<16x8x256xf32>
    %cst_5 = arith.constant dense<0.000000e+00> : vector<16x256xf32>
    %7 = vector.multi_reduction <add>, %6, %cst_5 [1] : vector<16x8x256xf32> to vector<16x256xf32>
    %cst_6 = arith.constant 8.000000e+00 : f32
    %8 = vector.broadcast %cst_6 : f32 to vector<16x256xf32>
    %9 = arith.divf %7, %8 : vector<16x256xf32>
    %c0_7 = arith.constant 0 : index
    %c0_8 = arith.constant 0 : index
    %10 = vector.load %arg4[%c0_7, %c0_8] : memref<16x256xf32, #tpu.memory_space<vmem>>, vector<16x256xf32>
    tpu.vector_store %arg4[%c0_7, %c0_8], %9 {strides = array<i32>} : memref<16x256xf32, #tpu.memory_space<vmem>>, vector<16x256xf32>,
    %11 = arith.mulf %5, %5 : vector<128x256xf32>
    %cst_9 = arith.constant dense<0.000000e+00> : vector<128xf32>
    %12 = vector.multi_reduction <add>, %11, %cst_9 [1] : vector<128x256xf32> to vector<128xf32>
    %13 = vector.shape_cast %12 : vector<128xf32> to vector<128x1xf32>
    %cst_10 = arith.constant 1.000000e-24 : f32
    %14 = vector.broadcast %cst_10 : f32 to vector<128x1xf32>
    %15 = arith.maximumf %13, %14 : vector<128x1xf32>
    %16 = math.rsqrt %15 : vector<128x1xf32>
    %17 = vector.broadcast %16 : vector<128x1xf32> to vector<128x256xf32>
    %18 = arith.mulf %5, %17 : vector<128x256xf32>
    %19 = arith.truncf %18 : vector<128x256xf32> to vector<128x256xbf16>
    %c0_11 = arith.constant 0 : index
    %c0_12 = arith.constant 0 : index
    %20 = vector.load %arg5[%c0_11, %c0_12] : memref<128x256xbf16, #tpu.memory_space<vmem>>, vector<128x256xbf16>
    tpu.vector_store %arg5[%c0_11, %c0_12], %19 {strides = array<i32>} : memref<128x256xbf16, #tpu.memory_space<vmem>>, vector<128x256xbf16>,
    return
  }
  func.func @transform_0(%arg0: i32) -> (i32, i32) {
    %c0_i32 = arith.constant 0 : i32
    %c0_i32_0 = arith.constant 0 : i32
    return %arg0, %c0_i32 : i32, i32
  }
  func.func @transform_1(%arg0: i32) -> (i32, i32) {
    %c0_i32 = arith.constant 0 : i32
    %c0_i32_0 = arith.constant 0 : i32
    %c0_i32_1 = arith.constant 0 : i32
    return %c0_i32, %c0_i32_0 : i32, i32
  }
  func.func @transform_2(%arg0: i32) -> (i32, i32) {
    %c0_i32 = arith.constant 0 : i32
    %c0_i32_0 = arith.constant 0 : i32
    %c0_i32_1 = arith.constant 0 : i32
    return %c0_i32, %c0_i32_0 : i32, i32
  }
  func.func @transform_3(%arg0: i32) -> (i32, i32) {
    %c0_i32 = arith.constant 0 : i32
    %c0_i32_0 = arith.constant 0 : i32
    return %arg0, %c0_i32 : i32, i32
  }
  func.func @transform_4(%arg0: i32) -> (i32, i32) {
    %c0_i32 = arith.constant 0 : i32
    %c0_i32_0 = arith.constant 0 : i32
    return %arg0, %c0_i32 : i32, i32
  }
}

</mosaic_0001>

<llo_original>
// kernel: tpu_custom_call.1
$region0: #{tpu_custom_call.1}
  #allocation0 [shape = 'u32[]', space=smem, size = 0x4, offset = 0x4, fixed_abs, tag = 'smem constant byte address 0x4 - core index']
  #allocation1 [shape = 'u32[144,128]{1,0:T(1,128)}', space=vmem, size = 0x12000, scoped, tag = 'internal scratch']
  %s0 = inlined_call_operand.hbm [shape: bf16[256,256], index: 0, kind: input, shape index: {}]
  %s1 = inlined_call_operand.hbm [shape: bf16[256,256], index: 1, kind: input, shape index: {}]
  %s2 = inlined_call_operand.vmem [shape: f32[1,256], index: 2, kind: input, shape index: {}]
  %s3 = inlined_call_operand.hbm [shape: f32[32,256], index: 3, kind: output, shape index: {0}]
  %s4 = inlined_call_operand.hbm [shape: bf16[256,256], index: 4, kind: output, shape index: {1}]
  %5 = xla_tuple %s3, %s4
  %s6 = sld [smem:[#allocation0]]
  $region61: #{tpu_custom_call.1} parent=0
    _
  %s8 = ssub.s32 1, %s6
  %s9 = scalar_select 0, %s8, %s6
  $region1: #{tpu_custom_call.1} parent=0
    #allocation2 [shape = 'u8[131072]{0}', space=vmem, size = 0x20000, scoped, tag = 'input window, operand 0']
    #allocation3 [shape = 's32[2]{0}', space=sflag, size = 0x8, scoped, tag = 'scoped memory for tpu_custom_call.1']
    #allocation4 [shape = 's32[2]{0}', space=sflag, size = 0x8, scoped, tag = 'scoped memory for tpu_custom_call.1']
    #allocation5 [shape = 'u8[131072]{0}', space=vmem, size = 0x20000, scoped, tag = 'input window, operand 1, single buffered']
    #allocation6 [shape = 's32[1]{0}', space=sflag, size = 0x4, scoped, tag = 'scoped memory for tpu_custom_call.1']
    #allocation7 [shape = 'u8[32768]{0}', space=vmem, size = 0x8000, scoped, tag = 'output window, operand 0']
    #allocation8 [shape = 'u8[131072]{0}', space=vmem, size = 0x20000, scoped, tag = 'output window, operand 1']
    #allocation9 [shape = 's32[2]{0}', space=sflag, size = 0x8, scoped, tag = 'scoped memory for tpu_custom_call.1']
    %10 = vsyncpa [#allocation3], 0
    %s11 = scalar_lea.sflag [#allocation3], 1
    %12 = vsyncpa %s11, 0
    %13 = vsyncpa [#allocation6], 0
    %14 = vsyncpa [#allocation4], 0
    %s15 = scalar_lea.sflag [#allocation4], 1
    %16 = vsyncpa %s15, 0
    %17 = vsyncpa [#allocation9], 0
    %s18 = scalar_lea.sflag [#allocation9], 1
    %19 = vsyncpa %s18, 0
    loop: start=0, step=1, limit=4
    $region2: #{tpu_custom_call.1} parent=1 // loop_pre_header
      _
    $region3: #{tpu_custom_call.1} parent=1 // loop_header
      %s21 = sphi 0, %s25
      %p22 = scmp.ge.s32.totalorder %s21, 4
      %s31 = sphi 0, %s33
      %s34 = sphi 0, %s31
      %s35 = sphi 0, %s34
      %s51 = sphi 0, %s35
      %s55 = sphi 0, %s55
      %s57 = sphi 0, %s55
      %s58 = sphi 0, %s57
      %s72 = sphi 0, %s58
      %s76 = sphi 0, %s76
      %s78 = sphi 0, %s76
      %s79 = sphi 0, %s78
      %s93 = sphi 0, %s79
      %s99 = sphi 0, %s101
      %s102 = sphi 0, %s99
      %s103 = sphi 0, %s102
      %s119 = sphi 0, %s103
      %s125 = sphi 0, %s127
      %s128 = sphi 0, %s125
      %s129 = sphi 0, %s128
      %s145 = sphi 0, %s129
    $region4: #{tpu_custom_call.1} parent=1 // loop_header_branch
      %24 = sbr.rel (%p22) target = $region8
    $region5: #{tpu_custom_call.1} parent=1 // loop_body
      %s26 = ssub.s32 %s21, 1
      %s27 = ssub.s32 %s21, 2
      %s28 = sadd.s32 %s21, 1
      %s29 = ssub.s32 %s21, %s28
      %p30 = scmp.eq.s32.totalorder %s29, 0
      %s32 = sadd.s32 %s31, 1
      %s33 = scalar_select %p30, %s31, %s32
      %p36 = pneg %p30
      %p37 = scmp.eq.s32.totalorder %s21, 1
      %p38 = por %p36, %p37
      %p39 = scmp.ne.s32.totalorder %s31, %s34
      %p40 = scmp.eq.s32.totalorder %s21, 0
      %p41 = por %p39, %p40
      %p42 = scmp.ne.s32.totalorder %s31, %s34
      %p43 = scmp.eq.s32.totalorder %s26, 1
      %p44 = por %p42, %p43
      %p45 = scmp.ne.s32.totalorder %s34, %s35
      %p46 = scmp.eq.s32.totalorder %s26, 0
      %p47 = por %p45, %p46
      %p48 = scmp.ne.s32.totalorder %s34, %s35
      %p49 = scmp.eq.s32.totalorder %s27, 1
      %p50 = por %p48, %p49
      %p52 = scmp.ne.s32.totalorder %s35, %s51
      %p53 = scmp.eq.s32.totalorder %s27, 0
      %p54 = por %p52, %p53
      %s56 = sadd.s32 %s55, 1
      %p59 = scmp.eq.s32.totalorder %s21, 1
      %p60 = scmp.ne.s32.totalorder %s55, %s57
      %p61 = scmp.eq.s32.totalorder %s21, 0
      %p62 = por %p60, %p61
      %p63 = scmp.ne.s32.totalorder %s55, %s57
      %p64 = scmp.eq.s32.totalorder %s26, 1
      %p65 = por %p63, %p64
      %p66 = scmp.ne.s32.totalorder %s57, %s58
      %p67 = scmp.eq.s32.totalorder %s26, 0
      %p68 = por %p66, %p67
      %p69 = scmp.ne.s32.totalorder %s57, %s58
      %p70 = scmp.eq.s32.totalorder %s27, 1
      %p71 = por %p69, %p70
      %p73 = scmp.ne.s32.totalorder %s58, %s72
      %p74 = scmp.eq.s32.totalorder %s27, 0
      %p75 = por %p73, %p74
      %s77 = sadd.s32 %s76, 1
      %p80 = scmp.eq.s32.totalorder %s21, 1
      %p81 = scmp.ne.s32.totalorder %s76, %s78
      %p82 = scmp.eq.s32.totalorder %s21, 0
      %p83 = por %p81, %p82
      %p84 = scmp.ne.s32.totalorder %s76, %s78
      %p85 = scmp.eq.s32.totalorder %s26, 1
      %p86 = por %p84, %p85
      %p87 = scmp.ne.s32.totalorder %s78, %s79
      %p88 = scmp.eq.s32.totalorder %s26, 0
      %p89 = por %p87, %p88
      %p90 = scmp.ne.s32.totalorder %s78, %s79
      %p91 = scmp.eq.s32.totalorder %s27, 1
      %p92 = por %p90, %p91
      %p94 = scmp.ne.s32.totalorder %s79, %s93
      %p95 = scmp.eq.s32.totalorder %s27, 0
      %p96 = por %p94, %p95
      %s97 = ssub.s32 %s21, %s28
      %p98 = scmp.eq.s32.totalorder %s97, 0
      %s100 = sadd.s32 %s99, 1
      %s101 = scalar_select %p98, %s99, %s100
      %p104 = pneg %p98
      %p105 = scmp.eq.s32.totalorder %s21, 1
      %p106 = por %p104, %p105
      %p107 = scmp.ne.s32.totalorder %s99, %s102
      %p108 = scmp.eq.s32.totalorder %s21, 0
      %p109 = por %p107, %p108
      %p110 = scmp.ne.s32.totalorder %s99, %s102
      %p111 = scmp.eq.s32.totalorder %s26, 1
      %p112 = por %p110, %p111
      %p113 = scmp.ne.s32.totalorder %s102, %s103
      %p114 = scmp.eq.s32.totalorder %s26, 0
      %p115 = por %p113, %p114
      %p116 = scmp.ne.s32.totalorder %s102, %s103
      %p117 = scmp.eq.s32.totalorder %s27, 1
      %p118 = por %p116, %p117
      %p120 = scmp.ne.s32.totalorder %s103, %s119
      %p121 = scmp.eq.s32.totalorder %s27, 0
      %p122 = por %p120, %p121
      %s123 = ssub.s32 %s21, %s28
      %p124 = scmp.eq.s32.totalorder %s123, 0
      %s126 = sadd.s32 %s125, 1
      %s127 = scalar_select %p124, %s125, %s126
      %p130 = pneg %p124
      %p131 = scmp.eq.s32.totalorder %s21, 1
      %p132 = por %p130, %p131
      %p133 = scmp.ne.s32.totalorder %s125, %s128
      %p134 = scmp.eq.s32.totalorder %s21, 0
      %p135 = por %p133, %p134
      %p136 = scmp.ne.s32.totalorder %s125, %s128
      %p137 = scmp.eq.s32.totalorder %s26, 1
      %p138 = por %p136, %p137
      %p139 = scmp.ne.s32.totalorder %s128, %s129
      %p140 = scmp.eq.s32.totalorder %s26, 0
      %p141 = por %p139, %p140
      %p142 = scmp.ne.s32.totalorder %s128, %s129
      %p143 = scmp.eq.s32.totalorder %s27, 1
      %p144 = por %p142, %p143
      %p146 = scmp.ne.s32.totalorder %s129, %s145
      %p147 = scmp.eq.s32.totalorder %s27, 0
      %p148 = por %p146, %p147
      %p149 = scmp.le.s32.totalorder 1, %s21
      %p150 = scmp.lt.s32.totalorder %s21, 3
      %p151 = pnand %p149, %p150
      %p152 = pneg %p151
      // Predicated region
      $region9: #{tpu_custom_call.1} parent=5 // pred_check
        _
      $region10: #{tpu_custom_call.1} parent=5 // pred_check_branch
        %154 = sbr.rel (%p151) target = $region12
      $region11: #{tpu_custom_call.1} parent=5 // pred_region
        %s155 = ssub.s32 %s21, 1
        // Predicated region
        $region13: #{tpu_custom_call.1} parent=11 // pred_check
          %p156 = pneg %p68
        $region14: #{tpu_custom_call.1} parent=11 // pred_check_branch
          %158 = sbr.rel (%p156) target = $region16
        $region15: #{tpu_custom_call.1} parent=11 // pred_region
          %s160 = ssub.s32 4096, 4096
          %161 = vsyncadd [#allocation6], %s160
          %s162 = sshll.u32 [#allocation5], 4
          %s163 = int_to_ptr.vmem [resolvable:$true] %s162
          %168 = dma.hbm_to_vmem [thread:$0]  %s1, 4096, %s163, [#allocation6], 128, 128, 8
        $region16: #{tpu_custom_call.1} parent=11 // pred_fallthru
          _
        // Predicated region
        $region17: #{tpu_custom_call.1} parent=11 // pred_check
          %p169 = pneg %p89
        $region18: #{tpu_custom_call.1} parent=11 // pred_check_branch
          %171 = sbr.rel (%p169) target = $region20
        $region19: #{tpu_custom_call.1} parent=11 // pred_region
          _
        $region20: #{tpu_custom_call.1} parent=11 // pred_fallthru
          _
      $region12: #{tpu_custom_call.1} parent=5 // pred_fallthru
        _
      %p172 = scmp.lt.s32.totalorder %s21, 2
      // Predicated region
      $region21: #{tpu_custom_call.1} parent=5 // pred_check
        %p173 = pneg %p172
      $region22: #{tpu_custom_call.1} parent=5 // pred_check_branch
        %175 = sbr.rel (%p173) target = $region24
      $region23: #{tpu_custom_call.1} parent=5 // pred_region
        // Predicated region
        $region25: #{tpu_custom_call.1} parent=23 // pred_check
          %p176 = pneg %p41
        $region26: #{tpu_custom_call.1} parent=23 // pred_check_branch
          %178 = sbr.rel (%p176) target = $region28
        $region27: #{tpu_custom_call.1} parent=23 // pred_region
          %s179 = sand.u32 %s31, 1
          %s180 = scalar_lea.sflag [#allocation3], %s179
          %s181 = sand.u32 %s31, 1
          %s182 = smul.addr %s181, 128
          %s183 = scalar_lea.vmem [#allocation2], %s182
          %s184 = smul.u32 16, %s21
          %s186 = ssub.s32 2048, 2048
          %187 = vsyncadd %s180, %s186
          %s188 = smul.addr %s184, 2
          %s189 = smul.addr %s188, 64
          %s190 = scalar_lea.hbm %s0, %s189
          %s191 = sshll.u32 %s183, 4
          %s192 = int_to_ptr.vmem [resolvable:$true] %s191
          %197 = dma.hbm_to_vmem [thread:$0]  %s190, 2048, %s192, %s180, 128, 128, 8
        $region28: #{tpu_custom_call.1} parent=23 // pred_fallthru
          _
      $region24: #{tpu_custom_call.1} parent=5 // pred_fallthru
        _
      %p198 = scmp.le.s32.totalorder 1, %s21
      %p199 = scmp.lt.s32.totalorder %s21, 3
      %p200 = pnand %p198, %p199
      %p201 = pneg %p200
      // Predicated region
      $region29: #{tpu_custom_call.1} parent=5 // pred_check
        _
      $region30: #{tpu_custom_call.1} parent=5 // pred_check_branch
        %203 = sbr.rel (%p200) target = $region32
      $region31: #{tpu_custom_call.1} parent=5 // pred_region
        %s204 = ssub.s32 %s21, 1
        %s205 = sand.u32 %s34, 1
        %s206 = scalar_lea.sflag [#allocation3], %s205
        %s207 = sand.u32 %s34, 1
        %s208 = smul.addr %s207, 128
        %s209 = scalar_lea.vmem [#allocation2], %s208
        // Predicated region
        $region33: #{tpu_custom_call.1} parent=31 // pred_check
          %p210 = pneg %p47
        $region34: #{tpu_custom_call.1} parent=31 // pred_check_branch
          %212 = sbr.rel (%p210) target = $region36
        $region35: #{tpu_custom_call.1} parent=31 // pred_region
          %213 = dma.done %s206, 2048
        $region36: #{tpu_custom_call.1} parent=31 // pred_fallthru
          _
        // Predicated region
        $region37: #{tpu_custom_call.1} parent=31 // pred_check
          %p214 = pneg %p68
        $region38: #{tpu_custom_call.1} parent=31 // pred_check_branch
          %216 = sbr.rel (%p214) target = $region40
        $region39: #{tpu_custom_call.1} parent=31 // pred_region
          %217 = dma.done [#allocation6], 4096
        $region40: #{tpu_custom_call.1} parent=31 // pred_fallthru
          _
        %s218 = sand.u32 %s34, 1
        %s219 = scalar_lea.sflag [#allocation3], %s218
        %s220 = sand.u32 %s34, 1
        %s221 = smul.addr %s220, 128
        %s222 = scalar_lea.vmem [#allocation2], %s221
        %p223 = pneg %p47
        %p224 = pneg %p44
        %p225 = pneg %p68
        %p226 = pneg %p65
        %p227 = pneg %p89
        %p228 = pneg %p86
        %p229 = pneg %p115
        %p230 = pneg %p112
        %s231 = sand.u32 %s102, 1
        %s232 = scalar_lea.sflag [#allocation4], %s231
        %s233 = sand.u32 %s102, 1
        %s234 = smul.addr %s233, 32
        %s235 = scalar_lea.vmem [#allocation7], %s234
        %p236 = pneg %p141
        %p237 = pneg %p138
        %s238 = sand.u32 %s128, 1
        %s239 = scalar_lea.sflag [#allocation9], %s238
        %s240 = sand.u32 %s128, 1
        %s241 = smul.addr %s240, 128
        %s242 = scalar_lea.vmem [#allocation8], %s241
        %s243 = smul.u32 16, %s26
        %s244 = smul.u32 2, %s26
        %s245 = smul.u32 16, %s26
        %v246 = vld [vmem:[%s209] sm:$0xff]
        %v247 = vld [vmem:[%s209 + $0x8] sm:$0xff]
        %v248 = vld [vmem:[%s209 + $0x10] sm:$0xff]
        %v249 = vld [vmem:[%s209 + $0x18] sm:$0xff]
        %v250 = vld [vmem:[%s209 + $0x20] sm:$0xff]
        %v251 = vld [vmem:[%s209 + $0x28] sm:$0xff]
        %v252 = vld [vmem:[%s209 + $0x30] sm:$0xff]
        %v253 = vld [vmem:[%s209 + $0x38] sm:$0xff]
        %v254 = vld [vmem:[%s209 + $0x40] sm:$0xff]
        %v255 = vld [vmem:[%s209 + $0x48] sm:$0xff]
        %v256 = vld [vmem:[%s209 + $0x50] sm:$0xff]
        %v257 = vld [vmem:[%s209 + $0x58] sm:$0xff]
        %v258 = vld [vmem:[%s209 + $0x60] sm:$0xff]
        %v259 = vld [vmem:[%s209 + $0x68] sm:$0xff]
        %v260 = vld [vmem:[%s209 + $0x70] sm:$0xff]
        %v261 = vld [vmem:[%s209 + $0x78] sm:$0xff]
        %v262 = vld [vmem:[#allocation5] sm:$0xff]
        %v263 = vld [vmem:[#allocation5 + $0x8] sm:$0xff]
        %v264 = vld [vmem:[#allocation5 + $0x10] sm:$0xff]
        %v265 = vld [vmem:[#allocation5 + $0x18] sm:$0xff]
        %v266 = vld [vmem:[#allocation5 + $0x20] sm:$0xff]
        %v267 = vld [vmem:[#allocation5 + $0x28] sm:$0xff]
        %v268 = vld [vmem:[#allocation5 + $0x30] sm:$0xff]
        %v269 = vld [vmem:[#allocation5 + $0x38] sm:$0xff]
        %v270 = vld [vmem:[#allocation5 + $0x40] sm:$0xff]
        %v271 = vld [vmem:[#allocation5 + $0x48] sm:$0xff]
        %v272 = vld [vmem:[#allocation5 + $0x50] sm:$0xff]
        %v273 = vld [vmem:[#allocation5 + $0x58] sm:$0xff]
        %v274 = vld [vmem:[#allocation5 + $0x60] sm:$0xff]
        %v275 = vld [vmem:[#allocation5 + $0x68] sm:$0xff]
        %v276 = vld [vmem:[#allocation5 + $0x70] sm:$0xff]
        %v277 = vld [vmem:[#allocation5 + $0x78] sm:$0xff]
        %v278 = vld [vmem:[#allocation5 + $0x80] sm:$0xff]
        %v279 = vld [vmem:[#allocation5 + $0x88] sm:$0xff]
        %v280 = vld [vmem:[#allocation5 + $0x90] sm:$0xff]
        %v281 = vld [vmem:[#allocation5 + $0x98] sm:$0xff]
        %v282 = vld [vmem:[#allocation5 + $0xa0] sm:$0xff]
        %v283 = vld [vmem:[#allocation5 + $0xa8] sm:$0xff]
        %v284 = vld [vmem:[#allocation5 + $0xb0] sm:$0xff]
        %v285 = vld [vmem:[#allocation5 + $0xb8] sm:$0xff]
        %v286 = vld [vmem:[#allocation5 + $0xc0] sm:$0xff]
        %v287 = vld [vmem:[#allocation5 + $0xc8] sm:$0xff]
        %v288 = vld [vmem:[#allocation5 + $0xd0] sm:$0xff]
        %v289 = vld [vmem:[#allocation5 + $0xd8] sm:$0xff]
        %v290 = vld [vmem:[#allocation5 + $0xe0] sm:$0xff]
        %v291 = vld [vmem:[#allocation5 + $0xe8] sm:$0xff]
        %v292 = vld [vmem:[#allocation5 + $0xf0] sm:$0xff]
        %v293 = vld [vmem:[#allocation5 + $0xf8] sm:$0xff]
        %v294 = vld [vmem:[%s2] sm:$0x3]
        %v296 = vlaneseq
        %v297 = vshrl.u32 %v296, 7
        %v298 = vsub.s32 0, %v297
        %v299 = vrot.slane %v294, %v298
        %v300 = vlaneseq
        %v301 = vshrl.u32 %v300, 7
        %v302 = vsub.s32 1, %v301
        %v303 = vrot.slane %v294, %v302
        %v322 = vunpack.c.l.b16 %v246
        %v323 = vunpack.c.h.b16 %v246
        %v324 = vunpack.c.l.b16 %v247
        %v325 = vunpack.c.h.b16 %v247
        %v326 = vunpack.c.l.b16 %v248
        %v327 = vunpack.c.h.b16 %v248
        %v328 = vunpack.c.l.b16 %v249
        %v329 = vunpack.c.h.b16 %v249
        %v330 = vunpack.c.l.b16 %v250
        %v331 = vunpack.c.h.b16 %v250
        %v332 = vunpack.c.l.b16 %v251
        %v333 = vunpack.c.h.b16 %v251
        %v334 = vunpack.c.l.b16 %v252
        %v335 = vunpack.c.h.b16 %v252
        %v336 = vunpack.c.l.b16 %v253
        %v337 = vunpack.c.h.b16 %v253
        %v338 = vunpack.c.l.b16 %v254
        %v339 = vunpack.c.h.b16 %v254
        %v340 = vunpack.c.l.b16 %v255
        %v341 = vunpack.c.h.b16 %v255
        %v342 = vunpack.c.l.b16 %v256
        %v343 = vunpack.c.h.b16 %v256
        %v344 = vunpack.c.l.b16 %v257
        %v345 = vunpack.c.h.b16 %v257
        %v346 = vunpack.c.l.b16 %v258
        %v347 = vunpack.c.h.b16 %v258
        %v348 = vunpack.c.l.b16 %v259
        %v349 = vunpack.c.h.b16 %v259
        %v350 = vunpack.c.l.b16 %v260
        %v351 = vunpack.c.h.b16 %v260
        %v352 = vunpack.c.l.b16 %v261
        %v353 = vunpack.c.h.b16 %v261
        %v354 = vpack.c.b16 %v324, %v322
        %v355 = vpack.c.b16 %v325, %v323
        %v356 = vpack.c.b16 %v328, %v326
        %v357 = vpack.c.b16 %v329, %v327
        %v358 = vpack.c.b16 %v332, %v330
        %v359 = vpack.c.b16 %v333, %v331
        %v360 = vpack.c.b16 %v336, %v334
        %v361 = vpack.c.b16 %v337, %v335
        %v362 = vpack.c.b16 %v340, %v338
        %v363 = vpack.c.b16 %v341, %v339
        %v364 = vpack.c.b16 %v344, %v342
        %v365 = vpack.c.b16 %v345, %v343
        %v366 = vpack.c.b16 %v348, %v346
        %v367 = vpack.c.b16 %v349, %v347
        %v368 = vpack.c.b16 %v352, %v350
        %v369 = vpack.c.b16 %v353, %v351
        %v418 = vunpack.c.l.b16 %v262
        %v419 = vunpack.c.h.b16 %v262
        %v420 = vunpack.c.l.b16 %v263
        %v421 = vunpack.c.h.b16 %v263
        %v422 = vunpack.c.l.b16 %v264
        %v423 = vunpack.c.h.b16 %v264
        %v424 = vunpack.c.l.b16 %v265
        %v425 = vunpack.c.h.b16 %v265
        %v426 = vunpack.c.l.b16 %v266
        %v427 = vunpack.c.h.b16 %v266
        %v428 = vunpack.c.l.b16 %v267
        %v429 = vunpack.c.h.b16 %v267
        %v430 = vunpack.c.l.b16 %v268
        %v431 = vunpack.c.h.b16 %v268
        %v432 = vunpack.c.l.b16 %v269
        %v433 = vunpack.c.h.b16 %v269
        %v434 = vunpack.c.l.b16 %v270
        %v435 = vunpack.c.h.b16 %v270
        %v436 = vunpack.c.l.b16 %v271
        %v437 = vunpack.c.h.b16 %v271
        %v438 = vunpack.c.l.b16 %v272
        %v439 = vunpack.c.h.b16 %v272
        %v440 = vunpack.c.l.b16 %v273
        %v441 = vunpack.c.h.b16 %v273
        %v442 = vunpack.c.l.b16 %v274
        %v443 = vunpack.c.h.b16 %v274
        %v444 = vunpack.c.l.b16 %v275
        %v445 = vunpack.c.h.b16 %v275
        %v446 = vunpack.c.l.b16 %v276
        %v447 = vunpack.c.h.b16 %v276
        %v448 = vunpack.c.l.b16 %v277
        %v449 = vunpack.c.h.b16 %v277
        %v450 = vunpack.c.l.b16 %v278
        %v451 = vunpack.c.h.b16 %v278
        %v452 = vunpack.c.l.b16 %v279
        %v453 = vunpack.c.h.b16 %v279
        %v454 = vunpack.c.l.b16 %v280
        %v455 = vunpack.c.h.b16 %v280
        %v456 = vunpack.c.l.b16 %v281
        %v457 = vunpack.c.h.b16 %v281
        %v458 = vunpack.c.l.b16 %v282
        %v459 = vunpack.c.h.b16 %v282
        %v460 = vunpack.c.l.b16 %v283
        %v461 = vunpack.c.h.b16 %v283
        %v462 = vunpack.c.l.b16 %v284
        %v463 = vunpack.c.h.b16 %v284
        %v464 = vunpack.c.l.b16 %v285
        %v465 = vunpack.c.h.b16 %v285
        %v466 = vunpack.c.l.b16 %v286
        %v467 = vunpack.c.h.b16 %v286
        %v468 = vunpack.c.l.b16 %v287
        %v469 = vunpack.c.h.b16 %v287
        %v470 = vunpack.c.l.b16 %v288
        %v471 = vunpack.c.h.b16 %v288
        %v472 = vunpack.c.l.b16 %v289
        %v473 = vunpack.c.h.b16 %v289
        %v474 = vunpack.c.l.b16 %v290
        %v475 = vunpack.c.h.b16 %v290
        %v476 = vunpack.c.l.b16 %v291
        %v477 = vunpack.c.h.b16 %v291
        %v478 = vunpack.c.l.b16 %v292
        %v479 = vunpack.c.h.b16 %v292
        %v480 = vunpack.c.l.b16 %v293
        %v481 = vunpack.c.h.b16 %v293
        %v482 = vpack.c.b16 %v420, %v418
        %v483 = vpack.c.b16 %v421, %v419
        %v484 = vpack.c.b16 %v424, %v422
        %v485 = vpack.c.b16 %v425, %v423
        %v486 = vpack.c.b16 %v428, %v426
        %v487 = vpack.c.b16 %v429, %v427
        %v488 = vpack.c.b16 %v432, %v430
        %v489 = vpack.c.b16 %v433, %v431
        %v490 = vpack.c.b16 %v436, %v434
        %v491 = vpack.c.b16 %v437, %v435
        %v492 = vpack.c.b16 %v440, %v438
        %v493 = vpack.c.b16 %v441, %v439
        %v494 = vpack.c.b16 %v444, %v442
        %v495 = vpack.c.b16 %v445, %v443
        %v496 = vpack.c.b16 %v448, %v446
        %v497 = vpack.c.b16 %v449, %v447
        %v498 = vpack.c.b16 %v452, %v450
        %v499 = vpack.c.b16 %v453, %v451
        %v500 = vpack.c.b16 %v456, %v454
        %v501 = vpack.c.b16 %v457, %v455
        %v502 = vpack.c.b16 %v460, %v458
        %v503 = vpack.c.b16 %v461, %v459
        %v504 = vpack.c.b16 %v464, %v462
        %v505 = vpack.c.b16 %v465, %v463
        %v506 = vpack.c.b16 %v468, %v466
        %v507 = vpack.c.b16 %v469, %v467
        %v508 = vpack.c.b16 %v472, %v470
        %v509 = vpack.c.b16 %v473, %v471
        %v510 = vpack.c.b16 %v476, %v474
        %v511 = vpack.c.b16 %v477, %v475
        %v512 = vpack.c.b16 %v480, %v478
        %v513 = vpack.c.b16 %v481, %v479
        %546 = vmatprep.subr.bf16.mxu0 %v483
        %547 = vmatpush1.bf16.msra.mxu0 %v482
        %548 = vmatprep.subr.bf16.mxu0 %v485
        %549 = vmatpush1.bf16.msra.mxu0 %v484
        %550 = vmatprep.subr.bf16.mxu0 %v487
        %551 = vmatpush1.bf16.msra.mxu0 %v486
        %552 = vmatprep.subr.bf16.mxu0 %v489
        %553 = vmatpush1.bf16.msra.mxu0 %v488
        %554 = vmatprep.subr.bf16.mxu0 %v491
        %555 = vmatpush1.bf16.msra.mxu0 %v490
        %556 = vmatprep.subr.bf16.mxu0 %v493
        %557 = vmatpush1.bf16.msra.mxu0 %v492
        %558 = vmatprep.subr.bf16.mxu0 %v495
        %559 = vmatpush1.bf16.msra.mxu0 %v494
        %560 = vmatprep.subr.bf16.mxu0 %v497
        %561 = vmatpush1.bf16.msra.mxu0 %v496
        %562 = vmatprep.subr.bf16.mxu0 %v499
        %563 = vmatpush1.bf16.msra.mxu0 %v498
        %564 = vmatprep.subr.bf16.mxu0 %v501
        %565 = vmatpush1.bf16.msra.mxu0 %v500
        %566 = vmatprep.subr.bf16.mxu0 %v503
        %567 = vmatpush1.bf16.msra.mxu0 %v502
        %568 = vmatprep.subr.bf16.mxu0 %v505
        %569 = vmatpush1.bf16.msra.mxu0 %v504
        %570 = vmatprep.subr.bf16.mxu0 %v507
        %571 = vmatpush1.bf16.msra.mxu0 %v506
        %572 = vmatprep.subr.bf16.mxu0 %v509
        %573 = vmatpush1.bf16.msra.mxu0 %v508
        %574 = vmatprep.subr.bf16.mxu0 %v511
        %575 = vmatpush1.bf16.msra.mxu0 %v510
        %576 = vmatprep.subr.bf16.mxu0 %v513
        %577 = vmatpush1.bf16.msra.mxu0 %v512
        %578 = vmatprep.mubr.bf16.mxu0 %v355
        %579 = vmatmul.mubr.bf16.gmra.mrb[0].mxu0 %v354
        %v580 = vpop.f32.mrb[0].mxu0
        %v581 = vadd.f32 %v299, %v580
        %v582 = vpop.f32.mrb[0].mxu0
        %v583 = vadd.f32 %v303, %v582
        %v584 = vpop.f32.mrb[0].mxu0
        %v585 = vadd.f32 %v299, %v584
        %v586 = vpop.f32.mrb[0].mxu0
        %v587 = vadd.f32 %v303, %v586
        %588 = vmatprep.mubr.bf16.mxu0 %v357
        %589 = vmatmul.mubr.bf16.gmra.mrb[0].mxu0 %v356
        %v590 = vpop.f32.mrb[0].mxu0
        %v591 = vadd.f32 %v299, %v590
        %v592 = vpop.f32.mrb[0].mxu0
        %v593 = vadd.f32 %v303, %v592
        %v594 = vpop.f32.mrb[0].mxu0
        %v595 = vadd.f32 %v299, %v594
        %v596 = vpop.f32.mrb[0].mxu0
        %v597 = vadd.f32 %v303, %v596
        %598 = vmatprep.mubr.bf16.mxu0 %v359
        %599 = vmatmul.mubr.bf16.gmra.mrb[0].mxu0 %v358
        %v600 = vpop.f32.mrb[0].mxu0
        %v601 = vadd.f32 %v299, %v600
        %v602 = vpop.f32.mrb[0].mxu0
        %v603 = vadd.f32 %v303, %v602
        %v604 = vpop.f32.mrb[0].mxu0
        %v605 = vadd.f32 %v299, %v604
        %v606 = vpop.f32.mrb[0].mxu0
        %v607 = vadd.f32 %v303, %v606
        %608 = vmatprep.mubr.bf16.mxu0 %v361
        %609 = vmatmul.mubr.bf16.gmra.mrb[0].mxu0 %v360
        %v610 = vpop.f32.mrb[0].mxu0
        %v611 = vadd.f32 %v299, %v610
        %v612 = vpop.f32.mrb[0].mxu0
        %v613 = vadd.f32 %v303, %v612
        %v614 = vpop.f32.mrb[0].mxu0
        %v615 = vadd.f32 %v299, %v614
        %v616 = vpop.f32.mrb[0].mxu0
        %v617 = vadd.f32 %v303, %v616
        %618 = vmatprep.mubr.bf16.mxu0 %v363
        %619 = vmatmul.mubr.bf16.gmra.mrb[0].mxu0 %v362
        %v620 = vpop.f32.mrb[0].mxu0
        %v621 = vadd.f32 %v299, %v620
        %v622 = vpop.f32.mrb[0].mxu0
        %v623 = vadd.f32 %v303, %v622
        %v624 = vpop.f32.mrb[0].mxu0
        %v625 = vadd.f32 %v299, %v624
        %v626 = vpop.f32.mrb[0].mxu0
        %v627 = vadd.f32 %v303, %v626
        %628 = vmatprep.mubr.bf16.mxu0 %v365
        %629 = vmatmul.mubr.bf16.gmra.mrb[0].mxu0 %v364
        %v630 = vpop.f32.mrb[0].mxu0
        %v631 = vadd.f32 %v299, %v630
        %v632 = vpop.f32.mrb[0].mxu0
        %v633 = vadd.f32 %v303, %v632
        %v634 = vpop.f32.mrb[0].mxu0
        %v635 = vadd.f32 %v299, %v634
        %v636 = vpop.f32.mrb[0].mxu0
        %v637 = vadd.f32 %v303, %v636
        %638 = vmatprep.mubr.bf16.mxu0 %v367
        %639 = vmatmul.mubr.bf16.gmra.mrb[0].mxu0 %v366
        %v640 = vpop.f32.mrb[0].mxu0
        %v641 = vadd.f32 %v299, %v640
        %v642 = vpop.f32.mrb[0].mxu0
        %v643 = vadd.f32 %v303, %v642
        %v644 = vpop.f32.mrb[0].mxu0
        %v645 = vadd.f32 %v299, %v644
        %v646 = vpop.f32.mrb[0].mxu0
        %v647 = vadd.f32 %v303, %v646
        %648 = vmatprep.mubr.bf16.mxu0 %v369
        %649 = vmatmul.mubr.bf16.gmra.mrb[0].mxu0 %v368
        %v650 = vpop.f32.mrb[0].mxu0
        %v651 = vadd.f32 %v299, %v650
        %v652 = vpop.f32.mrb[0].mxu0
        %v653 = vadd.f32 %v303, %v652
        %v654 = vpop.f32.mrb[0].mxu0
        %v655 = vadd.f32 %v299, %v654
        %v656 = vpop.f32.mrb[0].mxu0
        %v657 = vadd.f32 %v303, %v656
        %658 = vdwg.mxu0
        %v659 = vrot.slane %v581, 4
        %v660 = vadd.f32 %v581, %v659
        %v661 = vrot.slane %v660, 2
        %v662 = vadd.f32 %v660, %v661
        %v663 = vrot.slane %v662, 1
        %v664 = vadd.f32 %v662, %v663
        %v665 = vrot.slane %v583, 4
        %v666 = vadd.f32 %v583, %v665
        %v667 = vrot.slane %v666, 2
        %v668 = vadd.f32 %v666, %v667
        %v669 = vrot.slane %v668, 1
        %v670 = vadd.f32 %v668, %v669
        %v671 = vrot.slane %v585, 4
        %v672 = vadd.f32 %v585, %v671
        %v673 = vrot.slane %v672, 2
        %v674 = vadd.f32 %v672, %v673
        %v675 = vrot.slane %v674, 1
        %v676 = vadd.f32 %v674, %v675
        %v677 = vrot.slane %v587, 4
        %v678 = vadd.f32 %v587, %v677
        %v679 = vrot.slane %v678, 2
        %v680 = vadd.f32 %v678, %v679
        %v681 = vrot.slane %v680, 1
        %v682 = vadd.f32 %v680, %v681
        %v683 = vrot.slane %v591, 4
        %v684 = vadd.f32 %v591, %v683
        %v685 = vrot.slane %v684, 2
        %v686 = vadd.f32 %v684, %v685
        %v687 = vrot.slane %v686, 1
        %v688 = vadd.f32 %v686, %v687
        %v689 = vrot.slane %v593, 4
        %v690 = vadd.f32 %v593, %v689
        %v691 = vrot.slane %v690, 2
        %v692 = vadd.f32 %v690, %v691
        %v693 = vrot.slane %v692, 1
        %v694 = vadd.f32 %v692, %v693
        %v695 = vrot.slane %v595, 4
        %v696 = vadd.f32 %v595, %v695
        %v697 = vrot.slane %v696, 2
        %v698 = vadd.f32 %v696, %v697
        %v699 = vrot.slane %v698, 1
        %v700 = vadd.f32 %v698, %v699
        %v701 = vrot.slane %v597, 4
        %v702 = vadd.f32 %v597, %v701
        %v703 = vrot.slane %v702, 2
        %v704 = vadd.f32 %v702, %v703
        %v705 = vrot.slane %v704, 1
        %v706 = vadd.f32 %v704, %v705
        %v707 = vrot.slane %v601, 4
        %v708 = vadd.f32 %v601, %v707
        %v709 = vrot.slane %v708, 2
        %v710 = vadd.f32 %v708, %v709
        %v711 = vrot.slane %v710, 1
        %v712 = vadd.f32 %v710, %v711
        %v713 = vrot.slane %v603, 4
        %v714 = vadd.f32 %v603, %v713
        %v715 = vrot.slane %v714, 2
        %v716 = vadd.f32 %v714, %v715
        %v717 = vrot.slane %v716, 1
        %v718 = vadd.f32 %v716, %v717
        %v719 = vrot.slane %v605, 4
        %v720 = vadd.f32 %v605, %v719
        %v721 = vrot.slane %v720, 2
        %v722 = vadd.f32 %v720, %v721
        %v723 = vrot.slane %v722, 1
        %v724 = vadd.f32 %v722, %v723
        %v725 = vrot.slane %v607, 4
        %v726 = vadd.f32 %v607, %v725
        %v727 = vrot.slane %v726, 2
        %v728 = vadd.f32 %v726, %v727
        %v729 = vrot.slane %v728, 1
        %v730 = vadd.f32 %v728, %v729
        %v731 = vrot.slane %v611, 4
        %v732 = vadd.f32 %v611, %v731
        %v733 = vrot.slane %v732, 2
        %v734 = vadd.f32 %v732, %v733
        %v735 = vrot.slane %v734, 1
        %v736 = vadd.f32 %v734, %v735
        %v737 = vrot.slane %v613, 4
        %v738 = vadd.f32 %v613, %v737
        %v739 = vrot.slane %v738, 2
        %v740 = vadd.f32 %v738, %v739
        %v741 = vrot.slane %v740, 1
        %v742 = vadd.f32 %v740, %v741
        %v743 = vrot.slane %v615, 4
        %v744 = vadd.f32 %v615, %v743
        %v745 = vrot.slane %v744, 2
        %v746 = vadd.f32 %v744, %v745
        %v747 = vrot.slane %v746, 1
        %v748 = vadd.f32 %v746, %v747
        %v749 = vrot.slane %v617, 4
        %v750 = vadd.f32 %v617, %v749
        %v751 = vrot.slane %v750, 2
        %v752 = vadd.f32 %v750, %v751
        %v753 = vrot.slane %v752, 1
        %v754 = vadd.f32 %v752, %v753
        %v755 = vrot.slane %v621, 4
        %v756 = vadd.f32 %v621, %v755
        %v757 = vrot.slane %v756, 2
        %v758 = vadd.f32 %v756, %v757
        %v759 = vrot.slane %v758, 1
        %v760 = vadd.f32 %v758, %v759
        %v761 = vrot.slane %v623, 4
        %v762 = vadd.f32 %v623, %v761
        %v763 = vrot.slane %v762, 2
        %v764 = vadd.f32 %v762, %v763
        %v765 = vrot.slane %v764, 1
        %v766 = vadd.f32 %v764, %v765
        %v767 = vrot.slane %v625, 4
        %v768 = vadd.f32 %v625, %v767
        %v769 = vrot.slane %v768, 2
        %v770 = vadd.f32 %v768, %v769
        %v771 = vrot.slane %v770, 1
        %v772 = vadd.f32 %v770, %v771
        %v773 = vrot.slane %v627, 4
        %v774 = vadd.f32 %v627, %v773
        %v775 = vrot.slane %v774, 2
        %v776 = vadd.f32 %v774, %v775
        %v777 = vrot.slane %v776, 1
        %v778 = vadd.f32 %v776, %v777
        %v779 = vrot.slane %v631, 4
        %v780 = vadd.f32 %v631, %v779
        %v781 = vrot.slane %v780, 2
        %v782 = vadd.f32 %v780, %v781
        %v783 = vrot.slane %v782, 1
        %v784 = vadd.f32 %v782, %v783
        %v785 = vrot.slane %v633, 4
        %v786 = vadd.f32 %v633, %v785
        %v787 = vrot.slane %v786, 2
        %v788 = vadd.f32 %v786, %v787
        %v789 = vrot.slane %v788, 1
        %v790 = vadd.f32 %v788, %v789
        %v791 = vrot.slane %v635, 4
        %v792 = vadd.f32 %v635, %v791
        %v793 = vrot.slane %v792, 2
        %v794 = vadd.f32 %v792, %v793
        %v795 = vrot.slane %v794, 1
        %v796 = vadd.f32 %v794, %v795
        %v797 = vrot.slane %v637, 4
        %v798 = vadd.f32 %v637, %v797
        %v799 = vrot.slane %v798, 2
        %v800 = vadd.f32 %v798, %v799
        %v801 = vrot.slane %v800, 1
        %v802 = vadd.f32 %v800, %v801
        %v803 = vrot.slane %v641, 4
        %v804 = vadd.f32 %v641, %v803
        %v805 = vrot.slane %v804, 2
        %v806 = vadd.f32 %v804, %v805
        %v807 = vrot.slane %v806, 1
        %v808 = vadd.f32 %v806, %v807
        %v809 = vrot.slane %v643, 4
        %v810 = vadd.f32 %v643, %v809
        %v811 = vrot.slane %v810, 2
        %v812 = vadd.f32 %v810, %v811
        %v813 = vrot.slane %v812, 1
        %v814 = vadd.f32 %v812, %v813
        %v815 = vrot.slane %v645, 4
        %v816 = vadd.f32 %v645, %v815
        %v817 = vrot.slane %v816, 2
        %v818 = vadd.f32 %v816, %v817
        %v819 = vrot.slane %v818, 1
        %v820 = vadd.f32 %v818, %v819
        %v821 = vrot.slane %v647, 4
        %v822 = vadd.f32 %v647, %v821
        %v823 = vrot.slane %v822, 2
        %v824 = vadd.f32 %v822, %v823
        %v825 = vrot.slane %v824, 1
        %v826 = vadd.f32 %v824, %v825
        %v827 = vrot.slane %v651, 4
        %v828 = vadd.f32 %v651, %v827
        %v829 = vrot.slane %v828, 2
        %v830 = vadd.f32 %v828, %v829
        %v831 = vrot.slane %v830, 1
        %v832 = vadd.f32 %v830, %v831
        %v833 = vrot.slane %v653, 4
        %v834 = vadd.f32 %v653, %v833
        %v835 = vrot.slane %v834, 2
        %v836 = vadd.f32 %v834, %v835
        %v837 = vrot.slane %v836, 1
        %v838 = vadd.f32 %v836, %v837
        %v839 = vrot.slane %v655, 4
        %v840 = vadd.f32 %v655, %v839
        %v841 = vrot.slane %v840, 2
        %v842 = vadd.f32 %v840, %v841
        %v843 = vrot.slane %v842, 1
        %v844 = vadd.f32 %v842, %v843
        %v845 = vrot.slane %v657, 4
        %v846 = vadd.f32 %v657, %v845
        %v847 = vrot.slane %v846, 2
        %v848 = vadd.f32 %v846, %v847
        %v849 = vrot.slane %v848, 1
        %v850 = vadd.f32 %v848, %v849
        %v851 = vrcp.pop 8.0
        %v852 = vmul.f32 %v664, %v851
        %v853 = vmul.f32 %v670, %v851
        %v854 = vmul.f32 %v676, %v851
        %v855 = vmul.f32 %v682, %v851
        %v856 = vmul.f32 %v688, %v851
        %v857 = vmul.f32 %v694, %v851
        %v858 = vmul.f32 %v700, %v851
        %v859 = vmul.f32 %v706, %v851
        %v860 = vmul.f32 %v712, %v851
        %v861 = vmul.f32 %v718, %v851
        %v862 = vmul.f32 %v724, %v851
        %v863 = vmul.f32 %v730, %v851
        %v864 = vmul.f32 %v736, %v851
        %v865 = vmul.f32 %v742, %v851
        %v866 = vmul.f32 %v748, %v851
        %v867 = vmul.f32 %v754, %v851
        %v868 = vmul.f32 %v760, %v851
        %v869 = vmul.f32 %v766, %v851
        %v870 = vmul.f32 %v772, %v851
        %v871 = vmul.f32 %v778, %v851
        %v872 = vmul.f32 %v784, %v851
        %v873 = vmul.f32 %v790, %v851
        %v874 = vmul.f32 %v796, %v851
        %v875 = vmul.f32 %v802, %v851
        %v876 = vmul.f32 %v808, %v851
        %v877 = vmul.f32 %v814, %v851
        %v878 = vmul.f32 %v820, %v851
        %v879 = vmul.f32 %v826, %v851
        %v880 = vmul.f32 %v832, %v851
        %v881 = vmul.f32 %v838, %v851
        %v882 = vmul.f32 %v844, %v851
        %v883 = vmul.f32 %v850, %v851
        %vm916 = vcmask 1041409
        %v917 = vsel %vm916, %v854, %v852
        %vm918 = vcmask 1042434
        %v919 = vsel %vm918, %v856, %v917
        %vm920 = vcmask 1043459
        %v921 = vsel %vm920, %v858, %v919
        %vm922 = vcmask 1044484
        %v923 = vsel %vm922, %v860, %v921
        %vm924 = vcmask 1045509
        %v925 = vsel %vm924, %v862, %v923
        %vm926 = vcmask 1046534
        %v927 = vsel %vm926, %v864, %v925
        %vm928 = vcmask 1047559
        %v929 = vsel %vm928, %v866, %v927
        %v930 = vsel %vm916, %v855, %v853
        %v931 = vsel %vm918, %v857, %v930
        %v932 = vsel %vm920, %v859, %v931
        %v933 = vsel %vm922, %v861, %v932
        %v934 = vsel %vm924, %v863, %v933
        %v935 = vsel %vm926, %v865, %v934
        %v936 = vsel %vm928, %v867, %v935
        %v937 = vsel %vm916, %v870, %v868
        %v938 = vsel %vm918, %v872, %v937
        %v939 = vsel %vm920, %v874, %v938
        %v940 = vsel %vm922, %v876, %v939
        %v941 = vsel %vm924, %v878, %v940
        %v942 = vsel %vm926, %v880, %v941
        %v943 = vsel %vm928, %v882, %v942
        %v944 = vsel %vm916, %v871, %v869
        %v945 = vsel %vm918, %v873, %v944
        %v946 = vsel %vm920, %v875, %v945
        %v947 = vsel %vm922, %v877, %v946
        %v948 = vsel %vm924, %v879, %v947
        %v949 = vsel %vm926, %v881, %v948
        %v950 = vsel %vm928, %v883, %v949
        %955 = vst [vmem:[%s235] sm:$0xff] %v929
        %956 = vst [vmem:[%s235 + $0x8] sm:$0xff] %v936
        %957 = vst [vmem:[%s235 + $0x10] sm:$0xff] %v943
        %958 = vst [vmem:[%s235 + $0x18] sm:$0xff] %v950
        %v959 = vmul.f32 %v581, %v581
        %v960 = vmul.f32 %v583, %v583
        %v961 = vmul.f32 %v585, %v585
        %v962 = vmul.f32 %v587, %v587
        %v963 = vmul.f32 %v591, %v591
        %v964 = vmul.f32 %v593, %v593
        %v965 = vmul.f32 %v595, %v595
        %v966 = vmul.f32 %v597, %v597
        %v967 = vmul.f32 %v601, %v601
        %v968 = vmul.f32 %v603, %v603
        %v969 = vmul.f32 %v605, %v605
        %v970 = vmul.f32 %v607, %v607
        %v971 = vmul.f32 %v611, %v611
        %v972 = vmul.f32 %v613, %v613
        %v973 = vmul.f32 %v615, %v615
        %v974 = vmul.f32 %v617, %v617
        %v975 = vmul.f32 %v621, %v621
        %v976 = vmul.f32 %v623, %v623
        %v977 = vmul.f32 %v625, %v625
        %v978 = vmul.f32 %v627, %v627
        %v979 = vmul.f32 %v631, %v631
        %v980 = vmul.f32 %v633, %v633
        %v981 = vmul.f32 %v635, %v635
        %v982 = vmul.f32 %v637, %v637
        %v983 = vmul.f32 %v641, %v641
        %v984 = vmul.f32 %v643, %v643
        %v985 = vmul.f32 %v645, %v645
        %v986 = vmul.f32 %v647, %v647
        %v987 = vmul.f32 %v651, %v651
        %v988 = vmul.f32 %v653, %v653
        %v989 = vmul.f32 %v655, %v655
        %v990 = vmul.f32 %v657, %v657
        %v991 = vadd.f32 %v959, %v960
        %992 = vadd.xlane.f32.xlu0 %v991
        %v993 = vpop.xlane.xlu0 %992
        %v994 = vadd.f32 %v961, %v962
        %995 = vadd.xlane.f32.xlu0 %v994
        %v996 = vpop.xlane.xlu0 %995
        %v997 = vadd.f32 %v963, %v964
        %998 = vadd.xlane.f32.xlu0 %v997
        %v999 = vpop.xlane.xlu0 %998
        %v1000 = vadd.f32 %v965, %v966
        %1001 = vadd.xlane.f32.xlu0 %v1000
        %v1002 = vpop.xlane.xlu0 %1001
        %v1003 = vadd.f32 %v967, %v968
        %1004 = vadd.xlane.f32.xlu0 %v1003
        %v1005 = vpop.xlane.xlu0 %1004
        %v1006 = vadd.f32 %v969, %v970
        %1007 = vadd.xlane.f32.xlu0 %v1006
        %v1008 = vpop.xlane.xlu0 %1007
        %v1009 = vadd.f32 %v971, %v972
        %1010 = vadd.xlane.f32.xlu0 %v1009
        %v1011 = vpop.xlane.xlu0 %1010
        %v1012 = vadd.f32 %v973, %v974
        %1013 = vadd.xlane.f32.xlu0 %v1012
        %v1014 = vpop.xlane.xlu0 %1013
        %v1015 = vadd.f32 %v975, %v976
        %1016 = vadd.xlane.f32.xlu0 %v1015
        %v1017 = vpop.xlane.xlu0 %1016
        %v1018 = vadd.f32 %v977, %v978
        %1019 = vadd.xlane.f32.xlu0 %v1018
        %v1020 = vpop.xlane.xlu0 %1019
        %v1021 = vadd.f32 %v979, %v980
        %1022 = vadd.xlane.f32.xlu0 %v1021
        %v1023 = vpop.xlane.xlu0 %1022
        %v1024 = vadd.f32 %v981, %v982
        %1025 = vadd.xlane.f32.xlu0 %v1024
        %v1026 = vpop.xlane.xlu0 %1025
        %v1027 = vadd.f32 %v983, %v984
        %1028 = vadd.xlane.f32.xlu0 %v1027
        %v1029 = vpop.xlane.xlu0 %1028
        %v1030 = vadd.f32 %v985, %v986
        %1031 = vadd.xlane.f32.xlu0 %v1030
        %v1032 = vpop.xlane.xlu0 %1031
        %v1033 = vadd.f32 %v987, %v988
        %1034 = vadd.xlane.f32.xlu0 %v1033
        %v1035 = vpop.xlane.xlu0 %1034
        %v1036 = vadd.f32 %v989, %v990
        %1037 = vadd.xlane.f32.xlu0 %v1036
        %v1038 = vpop.xlane.xlu0 %1037
        %v1039 = vmax.f32 %v993, 1e-24
        %v1040 = vmax.f32 %v996, 1e-24
        %v1041 = vmax.f32 %v999, 1e-24
        %v1042 = vmax.f32 %v1002, 1e-24
        %v1043 = vmax.f32 %v1005, 1e-24
        %v1044 = vmax.f32 %v1008, 1e-24
        %v1045 = vmax.f32 %v1011, 1e-24
        %v1046 = vmax.f32 %v1014, 1e-24
        %v1047 = vmax.f32 %v1017, 1e-24
        %v1048 = vmax.f32 %v1020, 1e-24
        %v1049 = vmax.f32 %v1023, 1e-24
        %v1050 = vmax.f32 %v1026, 1e-24
        %v1051 = vmax.f32 %v1029, 1e-24
        %v1052 = vmax.f32 %v1032, 1e-24
        %v1053 = vmax.f32 %v1035, 1e-24
        %v1054 = vmax.f32 %v1038, 1e-24
        %v1055 = vrsqrt.pop %v1039
        %v1056 = vrsqrt.pop %v1040
        %v1057 = vrsqrt.pop %v1041
        %v1058 = vrsqrt.pop %v1042
        %v1059 = vrsqrt.pop %v1043
        %v1060 = vrsqrt.pop %v1044
        %v1061 = vrsqrt.pop %v1045
        %v1062 = vrsqrt.pop %v1046
        %v1063 = vrsqrt.pop %v1047
        %v1064 = vrsqrt.pop %v1048
        %v1065 = vrsqrt.pop %v1049
        %v1066 = vrsqrt.pop %v1050
        %v1067 = vrsqrt.pop %v1051
        %v1068 = vrsqrt.pop %v1052
        %v1069 = vrsqrt.pop %v1053
        %v1070 = vrsqrt.pop %v1054
        %v1071 = vmul.f32 %v581, %v1055
        %v1072 = vmul.f32 %v583, %v1055
        %v1073 = vmul.f32 %v585, %v1056
        %v1074 = vmul.f32 %v587, %v1056
        %v1075 = vmul.f32 %v591, %v1057
        %v1076 = vmul.f32 %v593, %v1057
        %v1077 = vmul.f32 %v595, %v1058
        %v1078 = vmul.f32 %v597, %v1058
        %v1079 = vmul.f32 %v601, %v1059
        %v1080 = vmul.f32 %v603, %v1059
        %v1081 = vmul.f32 %v605, %v1060
        %v1082 = vmul.f32 %v607, %v1060
        %v1083 = vmul.f32 %v611, %v1061
        %v1084 = vmul.f32 %v613, %v1061
        %v1085 = vmul.f32 %v615, %v1062
        %v1086 = vmul.f32 %v617, %v1062
        %v1087 = vmul.f32 %v621, %v1063
        %v1088 = vmul.f32 %v623, %v1063
        %v1089 = vmul.f32 %v625, %v1064
        %v1090 = vmul.f32 %v627, %v1064
        %v1091 = vmul.f32 %v631, %v1065
        %v1092 = vmul.f32 %v633, %v1065
        %v1093 = vmul.f32 %v635, %v1066
        %v1094 = vmul.f32 %v637, %v1066
        %v1095 = vmul.f32 %v641, %v1067
        %v1096 = vmul.f32 %v643, %v1067
        %v1097 = vmul.f32 %v645, %v1068
        %v1098 = vmul.f32 %v647, %v1068
        %v1099 = vmul.f32 %v651, %v1069
        %v1100 = vmul.f32 %v653, %v1069
        %v1101 = vmul.f32 %v655, %v1070
        %v1102 = vmul.f32 %v657, %v1070
        %v1103 = vpack.c.bf16 %v1073, %v1071
        %v1104 = vpack.c.bf16 %v1074, %v1072
        %v1105 = vpack.c.bf16 %v1077, %v1075
        %v1106 = vpack.c.bf16 %v1078, %v1076
        %v1107 = vpack.c.bf16 %v1081, %v1079
        %v1108 = vpack.c.bf16 %v1082, %v1080
        %v1109 = vpack.c.bf16 %v1085, %v1083
        %v1110 = vpack.c.bf16 %v1086, %v1084
        %v1111 = vpack.c.bf16 %v1089, %v1087
        %v1112 = vpack.c.bf16 %v1090, %v1088
        %v1113 = vpack.c.bf16 %v1093, %v1091
        %v1114 = vpack.c.bf16 %v1094, %v1092
        %v1115 = vpack.c.bf16 %v1097, %v1095
        %v1116 = vpack.c.bf16 %v1098, %v1096
        %v1117 = vpack.c.bf16 %v1101, %v1099
        %v1118 = vpack.c.bf16 %v1102, %v1100
        %v1135 = vunpack.c.l.b16 %v1103
        %v1136 = vunpack.c.l.b16 %v1104
        %v1137 = vunpack.c.h.b16 %v1103
        %v1138 = vunpack.c.h.b16 %v1104
        %v1139 = vunpack.c.l.b16 %v1105
        %v1140 = vunpack.c.l.b16 %v1106
        %v1141 = vunpack.c.h.b16 %v1105
        %v1142 = vunpack.c.h.b16 %v1106
        %v1143 = vunpack.c.l.b16 %v1107
        %v1144 = vunpack.c.l.b16 %v1108
        %v1145 = vunpack.c.h.b16 %v1107
        %v1146 = vunpack.c.h.b16 %v1108
        %v1147 = vunpack.c.l.b16 %v1109
        %v1148 = vunpack.c.l.b16 %v1110
        %v1149 = vunpack.c.h.b16 %v1109
        %v1150 = vunpack.c.h.b16 %v1110
        %v1151 = vunpack.c.l.b16 %v1111
        %v1152 = vunpack.c.l.b16 %v1112
        %v1153 = vunpack.c.h.b16 %v1111
        %v1154 = vunpack.c.h.b16 %v1112
        %v1155 = vunpack.c.l.b16 %v1113
        %v1156 = vunpack.c.l.b16 %v1114
        %v1157 = vunpack.c.h.b16 %v1113
        %v1158 = vunpack.c.h.b16 %v1114
        %v1159 = vunpack.c.l.b16 %v1115
        %v1160 = vunpack.c.l.b16 %v1116
        %v1161 = vunpack.c.h.b16 %v1115
        %v1162 = vunpack.c.h.b16 %v1116
        %v1163 = vunpack.c.l.b16 %v1117
        %v1164 = vunpack.c.l.b16 %v1118
        %v1165 = vunpack.c.h.b16 %v1117
        %v1166 = vunpack.c.h.b16 %v1118
        %v1167 = vpack.c.b16 %v1136, %v1135
        %v1168 = vpack.c.b16 %v1138, %v1137
        %v1169 = vpack.c.b16 %v1140, %v1139
        %v1170 = vpack.c.b16 %v1142, %v1141
        %v1171 = vpack.c.b16 %v1144, %v1143
        %v1172 = vpack.c.b16 %v1146, %v1145
        %v1173 = vpack.c.b16 %v1148, %v1147
        %v1174 = vpack.c.b16 %v1150, %v1149
        %v1175 = vpack.c.b16 %v1152, %v1151
        %v1176 = vpack.c.b16 %v1154, %v1153
        %v1177 = vpack.c.b16 %v1156, %v1155
        %v1178 = vpack.c.b16 %v1158, %v1157
        %v1179 = vpack.c.b16 %v1160, %v1159
        %v1180 = vpack.c.b16 %v1162, %v1161
        %v1181 = vpack.c.b16 %v1164, %v1163
        %v1182 = vpack.c.b16 %v1166, %v1165
        %1199 = vst [vmem:[%s242] sm:$0xff] %v1167
        %1200 = vst [vmem:[%s242 + $0x8] sm:$0xff] %v1168
        %1201 = vst [vmem:[%s242 + $0x10] sm:$0xff] %v1169
        %1202 = vst [vmem:[%s242 + $0x18] sm:$0xff] %v1170
        %1203 = vst [vmem:[%s242 + $0x20] sm:$0xff] %v1171
        %1204 = vst [vmem:[%s242 + $0x28] sm:$0xff] %v1172
        %1205 = vst [vmem:[%s242 + $0x30] sm:$0xff] %v1173
        %1206 = vst [vmem:[%s242 + $0x38] sm:$0xff] %v1174
        %1207 = vst [vmem:[%s242 + $0x40] sm:$0xff] %v1175
        %1208 = vst [vmem:[%s242 + $0x48] sm:$0xff] %v1176
        %1209 = vst [vmem:[%s242 + $0x50] sm:$0xff] %v1177
        %1210 = vst [vmem:[%s242 + $0x58] sm:$0xff] %v1178
        %1211 = vst [vmem:[%s242 + $0x60] sm:$0xff] %v1179
        %1212 = vst [vmem:[%s242 + $0x68] sm:$0xff] %v1180
        %1213 = vst [vmem:[%s242 + $0x70] sm:$0xff] %v1181
        %1214 = vst [vmem:[%s242 + $0x78] sm:$0xff] %v1182
        %s1215 = sand.u32 %s102, 1
        %s1216 = scalar_lea.sflag [#allocation4], %s1215
        %s1217 = sand.u32 %s102, 1
        %s1218 = smul.addr %s1217, 32
        %s1219 = scalar_lea.vmem [#allocation7], %s1218
        %s1220 = sand.u32 %s128, 1
        %s1221 = scalar_lea.sflag [#allocation9], %s1220
        %s1222 = sand.u32 %s128, 1
        %s1223 = smul.addr %s1222, 128
        %s1224 = scalar_lea.vmem [#allocation8], %s1223
        // Predicated region
        $region41: #{tpu_custom_call.1} parent=31 // pred_check
          %p1225 = pneg %p112
        $region42: #{tpu_custom_call.1} parent=31 // pred_check_branch
          %1227 = sbr.rel (%p1225) target = $region44
        $region43: #{tpu_custom_call.1} parent=31 // pred_region
          %s1228 = smul.u32 2, %s26
          %s1230 = ssub.s32 512, 512
          %1231 = vsyncadd %s1216, %s1230
          %s1232 = smul.addr %s1228, 2
          %s1233 = smul.addr %s1232, 128
          %s1234 = scalar_lea.hbm %s3, %s1233
          %s1235 = sshll.u32 %s1219, 4
          %s1236 = int_to_ptr.vmem [resolvable:$true] %s1235
          %1241 = dma.vmem_to_hbm [thread:$0]  %s1236, 512, %s1234, %s1216, 256, 256, 16
        $region44: #{tpu_custom_call.1} parent=31 // pred_fallthru
          _
        // Predicated region
        $region45: #{tpu_custom_call.1} parent=31 // pred_check
          %p1242 = pneg %p138
        $region46: #{tpu_custom_call.1} parent=31 // pred_check_branch
          %1244 = sbr.rel (%p1242) target = $region48
        $region47: #{tpu_custom_call.1} parent=31 // pred_region
          %s1245 = smul.u32 16, %s26
          %s1247 = ssub.s32 2048, 2048
          %1248 = vsyncadd %s1221, %s1247
          %s1249 = smul.addr %s1245, 2
          %s1250 = smul.addr %s1249, 64
          %s1251 = scalar_lea.hbm %s4, %s1250
          %s1252 = sshll.u32 %s1224, 4
          %s1253 = int_to_ptr.vmem [resolvable:$true] %s1252
          %1258 = dma.vmem_to_hbm [thread:$0]  %s1253, 2048, %s1251, %s1221, 128, 128, 8
        $region48: #{tpu_custom_call.1} parent=31 // pred_fallthru
          _
      $region32: #{tpu_custom_call.1} parent=5 // pred_fallthru
        _
      %p1259 = scmp.le.s32.totalorder 2, %s21
      // Predicated region
      $region49: #{tpu_custom_call.1} parent=5 // pred_check
        %p1260 = pneg %p1259
      $region50: #{tpu_custom_call.1} parent=5 // pred_check_branch
        %1262 = sbr.rel (%p1260) target = $region52
      $region51: #{tpu_custom_call.1} parent=5 // pred_region
        %s1263 = ssub.s32 %s21, 2
        // Predicated region
        $region53: #{tpu_custom_call.1} parent=51 // pred_check
          %p1264 = pneg %p118
        $region54: #{tpu_custom_call.1} parent=51 // pred_check_branch
          %1266 = sbr.rel (%p1264) target = $region56
        $region55: #{tpu_custom_call.1} parent=51 // pred_region
          %s1267 = sand.u32 %s103, 1
          %s1268 = scalar_lea.sflag [#allocation4], %s1267
          %s1269 = sand.u32 %s103, 1
          %s1270 = smul.addr %s1269, 32
          %s1271 = scalar_lea.vmem [#allocation7], %s1270
          %1272 = dma.done %s1268, 512
        $region56: #{tpu_custom_call.1} parent=51 // pred_fallthru
          _
        // Predicated region
        $region57: #{tpu_custom_call.1} parent=51 // pred_check
          %p1273 = pneg %p144
        $region58: #{tpu_custom_call.1} parent=51 // pred_check_branch
          %1275 = sbr.rel (%p1273) target = $region60
        $region59: #{tpu_custom_call.1} parent=51 // pred_region
          %s1276 = sand.u32 %s129, 1
          %s1277 = scalar_lea.sflag [#allocation9], %s1276
          %s1278 = sand.u32 %s129, 1
          %s1279 = smul.addr %s1278, 128
          %s1280 = scalar_lea.vmem [#allocation8], %s1279
          %1281 = dma.done %s1277, 2048
        $region60: #{tpu_custom_call.1} parent=51 // pred_fallthru
          _
      $region52: #{tpu_custom_call.1} parent=5 // pred_fallthru
        _
    $region6: #{tpu_custom_call.1} parent=1 // loop_footer
      %s25 = sadd.s32 1, %s21
    $region7: #{tpu_custom_call.1} parent=1 // loop_footer_branch
      %20 = sbr.rel target = $region3
    $region8: #{tpu_custom_call.1} parent=1 // loop_exit
      _
    %1282 = vsyncpa [#allocation3], 1
    %s1283 = scalar_lea.sflag [#allocation3], 1
    %1284 = vsyncpa %s1283, 1
    %1285 = vsyncpa [#allocation6], 1
    %1286 = vsyncpa [#allocation4], 1
    %s1287 = scalar_lea.sflag [#allocation4], 1
    %1288 = vsyncpa %s1287, 1
    %1289 = vsyncpa [#allocation9], 1
    %s1290 = scalar_lea.sflag [#allocation9], 1
    %1291 = vsyncpa %s1290, 1

</llo_original>
